<compile_context>
chip_gen: v5e
topology: v5e:2x2
jax: 0.10.0
libtpu: 0.0.40
codegen_flags: <defaults>
</compile_context>

<pallas_src>
import functools

import jax
import jax.numpy as jnp
from jax.experimental import pallas as pl
from jax.experimental.pallas import tpu as pltpu


_LN_EPS = 1e-5
_INV_SQRT2 = 0.7071067811865476


def _round_up(x, m):
    return (x + m - 1) // m * m


def _gelu_exact(x):
    # torch.nn.GELU() default (exact erf).  Kept in f32 (v5e VPU/EUP lack bf16).
    return 0.5 * x * (1.0 + jax.lax.erf(x * _INV_SQRT2))


def _tail_ensemble_kernel(*refs, num_nets, num_layers, dim_input):
    """One rep tile through ALL ensemble members + fused ensemble mean/std epilogue."""
    if num_layers >= 2:
        (x_ref, w0_ref, b0_ref, wh_ref, bh_ref, wo_ref, bo_ref,
         preds_ref, mean_ref, std_ref) = refs
    else:
        (x_ref, w0_ref, b0_ref, wo_ref, bo_ref,
         preds_ref, mean_ref, std_ref) = refs
        wh_ref = bh_ref = None

    x = x_ref[...]                                             # (TILE_N, D) f32

    # LayerNorm statistics are net-independent -> once per tile (not per net).
    mu = jnp.mean(x, axis=-1, keepdims=True)
    var = jnp.mean(jnp.square(x - mu), axis=-1, keepdims=True)
    xn = (x - mu) * jax.lax.rsqrt(var + _LN_EPS)               # (TILE_N, D)

    # Layer 0: per-net LN affine folded into the weights -> single dense K=D matmul
    # fanning the normalized rep out to all nets at once.
    h = jnp.dot(xn, w0_ref[...], preferred_element_type=jnp.float32) + b0_ref[...]
    h = _gelu_exact(h)

    # Remaining hidden layers: one block-diagonal (nd, nd) MXU matmul per layer.
    for l in range(num_layers - 1):
        h = jnp.dot(h, wh_ref[l], preferred_element_type=jnp.float32) + bh_ref[l]
        h = _gelu_exact(h)

    # Output heads, block-diagonally fused and zero-padded to a multiple of 128 output
    # columns -> unmasked lane-dense stores for the preds tile.
    y = jnp.dot(h, wo_ref[...], preferred_element_type=jnp.float32) + bo_ref[...]
    preds_ref[...] = y

    # Epilogue: ensemble mean / unbiased std written straight from VMEM (saves the XLA
    # re-read of preds from HBM).  Static per-net slices exclude the padded columns.
    d = dim_input
    acc = y[:, 0:d]
    for n in range(1, num_nets):
        acc = acc + y[:, n * d:(n + 1) * d]
    mean = acc * (1.0 / num_nets)
    mean_ref[...] = mean
    if num_nets == 1:
        std_ref[...] = jnp.zeros_like(mean)        # module returns zeros for 1 net
    else:
        ss = jnp.square(y[:, 0:d] - mean)
        for n in range(1, num_nets):
            ss = ss + jnp.square(y[:, n * d:(n + 1) * d] - mean)
        std_ref[...] = jnp.sqrt(ss * (1.0 / (num_nets - 1)))   # torch.std is unbiased


def fuse_tail_ensemble_params(ln_g, ln_b, w_h, b_h, w_o, b_o):
    """Fuse per-net parameters ONCE (model build / weight-update time, not per forward)."""
    f32 = jnp.float32
    num_nets, num_layers, D, _ = w_h.shape
    dim_input = w_o.shape[-1]
    ndo = num_nets * dim_input
    ndo_pad = _round_up(max(ndo, 128), 128)

    ln_g = ln_g.astype(f32).reshape(num_nets, D)
    ln_b = ln_b.astype(f32).reshape(num_nets, D)
    w_h = w_h.astype(f32)
    b_h = b_h.astype(f32).reshape(num_nets, num_layers, D)
    w_o = w_o.astype(f32)
    b_o = b_o.astype(f32).reshape(num_nets, dim_input)

    # Layer 0 with LN affine folded in:  (xn*g + b) @ W + bh == xn @ (g[:,None]*W) + (b@W + bh)
    w0 = jnp.concatenate([ln_g[n][:, None] * w_h[n, 0] for n in range(num_nets)], axis=1)
    b0 = jnp.concatenate([ln_b[n] @ w_h[n, 0] + b_h[n, 0] for n in range(num_nets)])[None, :]
    fused = {"w0": w0, "b0": b0}

    # Hidden layers 1..L-1: block-diagonal (num_nets*D, num_nets*D), net-major blocks.
    if num_layers >= 2:
        fused["wh"] = jnp.stack([
            jax.scipy.linalg.block_diag(*[w_h[n, l] for n in range(num_nets)])
            for l in range(1, num_layers)])
        fused["bh"] = jnp.stack([
            jnp.concatenate([b_h[n, l] for n in range(num_nets)])[None, :]
            for l in range(1, num_layers)])

    # Output heads: block-diagonal, zero-padded on columns to a multiple of 128 lanes.
    wo = jax.scipy.linalg.block_diag(*[w_o[n] for n in range(num_nets)])
    bo = jnp.concatenate([b_o[n] for n in range(num_nets)])[None, :]
    if ndo_pad != ndo:
        wo = jnp.pad(wo, ((0, 0), (0, ndo_pad - ndo)))
        bo = jnp.pad(bo, ((0, 0), (0, ndo_pad - ndo)))
    fused["wo"] = wo
    fused["bo"] = bo
    return fused


@functools.partial(jax.jit, static_argnames=("dim_input", "tile_n"))
def tail_ensemble_forward(rep, fused, *, dim_input, tile_n=1024):
    """rep: (B, S, D) -> (mean (B,S,Din), std (B,S,Din), preds (B,num_nets,S,Din))."""
    B, S, D = rep.shape
    N = B * S
    nd = fused["w0"].shape[1]
    num_nets = nd // D
    num_layers = 1 + (fused["wh"].shape[0] if "wh" in fused else 0)
    ndo_pad = fused["wo"].shape[1]
    ndo = num_nets * dim_input

    f32 = jnp.float32
    x = rep.reshape(N, D).astype(f32)                 # custom_fwd(cast_inputs=float32)

    # Token-axis tile: sublane-aligned, and >= 2 grid steps when N is large enough so the
    # "parallel" axis actually shards across both TensorCores on v7x.
    tn = max(8, _round_up(min(tile_n, N), 8))
    n_pad = _round_up(N, tn)
    if n_pad // tn < 2 and N > 256:
        tn = _round_up((N + 1) // 2, 8)
        n_pad = _round_up(N, tn)
    if n_pad != N:
        x = jnp.pad(x, ((0, n_pad - N), (0, 0)))
    grid = (n_pad // tn,)

    kernel = functools.partial(_tail_ensemble_kernel, num_nets=num_nets,
                               num_layers=num_layers, dim_input=dim_input)

    # All weight BlockSpecs have constant index_maps -> DMA'd once, VMEM-resident.
    in_specs = [pl.BlockSpec((tn, D), lambda i: (i, 0)),          # rep tile (streamed once)
                pl.BlockSpec((D, nd), lambda i: (0, 0)),          # layer-0 fused W (LN folded)
                pl.BlockSpec((1, nd), lambda i: (0, 0))]          # layer-0 fused b
    args = [x, fused["w0"], fused["b0"]]
    if num_layers >= 2:
        L1 = num_layers - 1
        in_specs += [pl.BlockSpec((L1, nd, nd), lambda i: (0, 0, 0)),  # hidden block-diag W
                     pl.BlockSpec((L1, 1, nd), lambda i: (0, 0, 0))]   # hidden b
        args += [fused["wh"], fused["bh"]]
    in_specs += [pl.BlockSpec((nd, ndo_pad), lambda i: (0, 0)),   # output block-diag W (padded)
                 pl.BlockSpec((1, ndo_pad), lambda i: (0, 0))]    # output b (padded)
    args += [fused["wo"], fused["bo"]]

    out_shape = (jax.ShapeDtypeStruct((n_pad, ndo_pad), f32),      # preds (lane-dense)
                 jax.ShapeDtypeStruct((n_pad, dim_input), f32),    # ensemble mean
                 jax.ShapeDtypeStruct((n_pad, dim_input), f32))    # ensemble std (ddof=1)
    out_specs = [pl.BlockSpec((tn, ndo_pad), lambda i: (i, 0)),
                 pl.BlockSpec((tn, dim_input), lambda i: (i, 0)),
                 pl.BlockSpec((tn, dim_input), lambda i: (i, 0))]

    preds_wide, mean_flat, std_flat = pl.pallas_call(
        kernel,
        out_shape=out_shape,
        grid_spec=pltpu.PrefetchScalarGridSpec(
            num_scalar_prefetch=0,
            grid=grid,
            in_specs=in_specs,
            out_specs=out_specs),
        compiler_params=pltpu.CompilerParams(
            dimension_semantics=("parallel",)),
    )(*args)

    mean = mean_flat[:N].reshape(B, S, dim_input)
    std = std_flat[:N].reshape(B, S, dim_input)
    # Only `preds` needs the torch (B, num_nets, S, Din) layout -> single fused
    # slice+reshape+transpose pass over the padded kernel output.
    preds = (preds_wide[:N, :ndo].reshape(B, S, num_nets, dim_input)
             .transpose(0, 2, 1, 3))
    return mean, std, preds


def reference_forward(rep, ln_g, ln_b, w_h, b_h, w_o, b_o):
    """Pure-JAX reference mirroring the PyTorch module, for correctness check."""
    num_nets, num_layers = w_h.shape[0], w_h.shape[1]
    x0 = rep.astype(jnp.float32)
    preds = []
    for n in range(num_nets):
        x = x0
        mu = jnp.mean(x, axis=-1, keepdims=True)
        var = jnp.mean(jnp.square(x - mu), axis=-1, keepdims=True)
        x = (x - mu) / jnp.sqrt(var + _LN_EPS) * ln_g[n, 0] + ln_b[n, 0]
        for l in range(num_layers):
            x = x @ w_h[n, l] + b_h[n, l, 0]
            x = jax.nn.gelu(x, approximate=False)
        x = x @ w_o[n] + b_o[n, 0]
        preds.append(x[:, None])
    preds = jnp.concatenate(preds, axis=1)
    mean = jnp.mean(preds, axis=1)
    std = jnp.zeros_like(mean) if num_nets == 1 else jnp.std(preds, axis=1, ddof=1)
    return mean, std, preds


if __name__ == "__main__":
    # Small synthetic config: dim_embed=32, dim_input=16, net_tail_num_nets=4, num_layers=2
    B, S, D = 2, 8, 32
    dim_input = 16
    num_nets = 4
    num_layers = 2

    key = jax.random.PRNGKey(0)
    k_rep, k_g, k_b, k_wh, k_bh, k_wo, k_bo = jax.random.split(key, 7)

    rep = jax.random.normal(k_rep, (B, S, D), dtype=jnp.float32)

    # Deterministic synthetic parameters (shapes follow the module's __init__/create()).
    ln_g = 1.0 + 0.1 * jax.random.normal(k_g, (num_nets, 1, D), jnp.float32)
    ln_b = 0.1 * jax.random.normal(k_b, (num_nets, 1, D), jnp.float32)
    w_h = jax.random.normal(k_wh, (num_nets, num_layers, D, D), jnp.float32) / jnp.sqrt(D)
    b_h = jax.random.normal(k_bh, (num_nets, num_layers, 1, D), jnp.float32) * 0.01
    w_o = jax.random.normal(k_wo, (num_nets, D, dim_input), jnp.float32) / jnp.sqrt(D)
    b_o = jax.random.normal(k_bo, (num_nets, 1, dim_input), jnp.float32) * 0.01

    # Fuse weights once (outside the jitted forward), then run the kernel.
    fused = fuse_tail_ensemble_params(ln_g, ln_b, w_h, b_h, w_o, b_o)
    fused = jax.tree_util.tree_map(jax.block_until_ready, fused)

    mean, std, preds = tail_ensemble_forward(rep, fused, dim_input=dim_input)
    jax.block_until_ready((mean, std, preds))

    mean_r, std_r, preds_r = reference_forward(rep, ln_g, ln_b, w_h, b_h, w_o, b_o)
    assert preds.shape == (B, num_nets, S, dim_input)
    assert mean.shape == (B, S, dim_input) and std.shape == (B, S, dim_input)
    assert jnp.allclose(preds, preds_r, atol=1e-4, rtol=1e-4)
    assert jnp.allclose(mean, mean_r, atol=1e-4, rtol=1e-4)
    assert jnp.allclose(std, std_r, atol=1e-4, rtol=1e-4)

    print("KERNEL_OK")
</pallas_src>

<mosaic_0001>
module attributes {stable_mosaic.version = 11 : i64} {
  func.func @_tail_ensemble_kernel(%arg0: i32, %arg1: memref<16x32xf32, #tpu.memory_space<vmem>>, %arg2: memref<32x128xf32, #tpu.memory_space<vmem>>, %arg3: memref<1x128xf32, #tpu.memory_space<vmem>>, %arg4: memref<1x128x128xf32, #tpu.memory_space<vmem>>, %arg5: memref<1x1x128xf32, #tpu.memory_space<vmem>>, %arg6: memref<128x128xf32, #tpu.memory_space<vmem>>, %arg7: memref<1x128xf32, #tpu.memory_space<vmem>>, %arg8: memref<16x128xf32, #tpu.memory_space<vmem>>, %arg9: memref<16x16xf32, #tpu.memory_space<vmem>>, %arg10: memref<16x16xf32, #tpu.memory_space<vmem>>) attributes {dimension_semantics = [#tpu.dimension_semantics<parallel>], iteration_bounds = array<i64: 1>, scalar_prefetch = 0 : i64, scratch_operands = 0 : i64, tpu.core_type = #tpu.core_type<tc>, window_params = [{transform_indices = @transform_0, window_bounds = array<i64: 16, 32>}, {pipeline_mode = #tpu.pipeline_mode<synchronous>, transform_indices = @transform_1, window_bounds = array<i64: 32, 128>}, {pipeline_mode = #tpu.pipeline_mode<synchronous>, transform_indices = @transform_2, window_bounds = array<i64: 1, 128>}, {pipeline_mode = #tpu.pipeline_mode<synchronous>, transform_indices = @transform_3, window_bounds = array<i64: 1, 128, 128>}, {pipeline_mode = #tpu.pipeline_mode<synchronous>, transform_indices = @transform_4, window_bounds = array<i64: 1, 1, 128>}, {pipeline_mode = #tpu.pipeline_mode<synchronous>, transform_indices = @transform_5, window_bounds = array<i64: 128, 128>}, {pipeline_mode = #tpu.pipeline_mode<synchronous>, transform_indices = @transform_6, window_bounds = array<i64: 1, 128>}, {transform_indices = @transform_7, window_bounds = array<i64: 16, 128>}, {transform_indices = @transform_8, window_bounds = array<i64: 16, 16>}, {transform_indices = @transform_9, window_bounds = array<i64: 16, 16>}]} {
    %c0 = arith.constant 0 : index
    %c0_0 = arith.constant 0 : index
    %0 = vector.load %arg1[%c0, %c0_0] : memref<16x32xf32, #tpu.memory_space<vmem>>, vector<16x32xf32>
    %cst = arith.constant dense<0.000000e+00> : vector<16xf32>
    %1 = vector.multi_reduction <add>, %0, %cst [1] : vector<16x32xf32> to vector<16xf32>
    %2 = vector.shape_cast %1 : vector<16xf32> to vector<16x1xf32>
    %cst_1 = arith.constant 3.200000e+01 : f32
    %3 = vector.broadcast %cst_1 : f32 to vector<16x1xf32>
    %4 = arith.divf %2, %3 : vector<16x1xf32>
    %5 = vector.broadcast %4 : vector<16x1xf32> to vector<16x32xf32>
    %6 = arith.subf %0, %5 : vector<16x32xf32>
    %7 = arith.mulf %6, %6 : vector<16x32xf32>
    %cst_2 = arith.constant dense<0.000000e+00> : vector<16xf32>
    %8 = vector.multi_reduction <add>, %7, %cst_2 [1] : vector<16x32xf32> to vector<16xf32>
    %9 = vector.shape_cast %8 : vector<16xf32> to vector<16x1xf32>
    %cst_3 = arith.constant 3.200000e+01 : f32
    %10 = vector.broadcast %cst_3 : f32 to vector<16x1xf32>
    %11 = arith.divf %9, %10 : vector<16x1xf32>
    %12 = vector.broadcast %4 : vector<16x1xf32> to vector<16x32xf32>
    %13 = arith.subf %0, %12 : vector<16x32xf32>
    %cst_4 = arith.constant 9.99999974E-6 : f32
    %14 = vector.broadcast %cst_4 : f32 to vector<16x1xf32>
    %15 = arith.addf %11, %14 : vector<16x1xf32>
    %16 = math.rsqrt %15 : vector<16x1xf32>
    %17 = vector.broadcast %16 : vector<16x1xf32> to vector<16x32xf32>
    %18 = arith.mulf %13, %17 : vector<16x32xf32>
    %c0_5 = arith.constant 0 : index
    %c0_6 = arith.constant 0 : index
    %19 = vector.load %arg2[%c0_5, %c0_6] : memref<32x128xf32, #tpu.memory_space<vmem>>, vector<32x128xf32>
    %cst_7 = arith.constant dense<0.000000e+00> : vector<16x128xf32>
    %20 = tpu.matmul %18, %19, %cst_7 {dimension_numbers = #tpu.dot_dimension_numbers<[1], [0], [0], [1], [0, 0, 1, 1], [], []>} : vector<16x32xf32>, vector<32x128xf32>, vector<16x128xf32> -> vector<16x128xf32>
    %c0_8 = arith.constant 0 : index
    %c0_9 = arith.constant 0 : index
    %21 = vector.load %arg3[%c0_8, %c0_9] : memref<1x128xf32, #tpu.memory_space<vmem>>, vector<1x128xf32>
    %22 = vector.broadcast %21 : vector<1x128xf32> to vector<16x128xf32>
    %23 = arith.addf %20, %22 : vector<16x128xf32>
    %cst_10 = arith.constant 5.000000e-01 : f32
    %24 = vector.broadcast %cst_10 : f32 to vector<16x128xf32>
    %25 = arith.mulf %24, %23 : vector<16x128xf32>
    %cst_11 = arith.constant 0.707106769 : f32
    %26 = vector.broadcast %cst_11 : f32 to vector<16x128xf32>
    %27 = arith.mulf %23, %26 : vector<16x128xf32>
    %28 = math.erf %27 : vector<16x128xf32>
    %cst_12 = arith.constant 1.000000e+00 : f32
    %29 = vector.broadcast %cst_12 : f32 to vector<16x128xf32>
    %30 = arith.addf %29, %28 : vector<16x128xf32>
    %31 = arith.mulf %25, %30 : vector<16x128xf32>
    %c0_13 = arith.constant 0 : index
    %c0_14 = arith.constant 0 : index
    %c0_15 = arith.constant 0 : index
    %32 = vector.load %arg4[%c0_13, %c0_14, %c0_15] : memref<1x128x128xf32, #tpu.memory_space<vmem>>, vector<1x128x128xf32>
    %33 = vector.shape_cast %32 : vector<1x128x128xf32> to vector<128x128xf32>
    %cst_16 = arith.constant dense<0.000000e+00> : vector<16x128xf32>
    %34 = tpu.matmul %31, %33, %cst_16 {dimension_numbers = #tpu.dot_dimension_numbers<[1], [0], [0], [1], [0, 0, 1, 1], [], []>} : vector<16x128xf32>, vector<128x128xf32>, vector<16x128xf32> -> vector<16x128xf32>
    %c0_17 = arith.constant 0 : index
    %c0_18 = arith.constant 0 : index
    %c0_19 = arith.constant 0 : index
    %35 = vector.load %arg5[%c0_17, %c0_18, %c0_19] : memref<1x1x128xf32, #tpu.memory_space<vmem>>, vector<1x1x128xf32>
    %36 = vector.shape_cast %35 : vector<1x1x128xf32> to vector<1x128xf32>
    %37 = vector.broadcast %36 : vector<1x128xf32> to vector<16x128xf32>
    %38 = arith.addf %34, %37 : vector<16x128xf32>
    %cst_20 = arith.constant 5.000000e-01 : f32
    %39 = vector.broadcast %cst_20 : f32 to vector<16x128xf32>
    %40 = arith.mulf %39, %38 : vector<16x128xf32>
    %cst_21 = arith.constant 0.707106769 : f32
    %41 = vector.broadcast %cst_21 : f32 to vector<16x128xf32>
    %42 = arith.mulf %38, %41 : vector<16x128xf32>
    %43 = math.erf %42 : vector<16x128xf32>
    %cst_22 = arith.constant 1.000000e+00 : f32
    %44 = vector.broadcast %cst_22 : f32 to vector<16x128xf32>
    %45 = arith.addf %44, %43 : vector<16x128xf32>
    %46 = arith.mulf %40, %45 : vector<16x128xf32>
    %c0_23 = arith.constant 0 : index
    %c0_24 = arith.constant 0 : index
    %47 = vector.load %arg6[%c0_23, %c0_24] : memref<128x128xf32, #tpu.memory_space<vmem>>, vector<128x128xf32>
    %cst_25 = arith.constant dense<0.000000e+00> : vector<16x128xf32>
    %48 = tpu.matmul %46, %47, %cst_25 {dimension_numbers = #tpu.dot_dimension_numbers<[1], [0], [0], [1], [0, 0, 1, 1], [], []>} : vector<16x128xf32>, vector<128x128xf32>, vector<16x128xf32> -> vector<16x128xf32>
    %c0_26 = arith.constant 0 : index
    %c0_27 = arith.constant 0 : index
    %49 = vector.load %arg7[%c0_26, %c0_27] : memref<1x128xf32, #tpu.memory_space<vmem>>, vector<1x128xf32>
    %50 = vector.broadcast %49 : vector<1x128xf32> to vector<16x128xf32>
    %51 = arith.addf %48, %50 : vector<16x128xf32>
    %c0_28 = arith.constant 0 : index
    %c0_29 = arith.constant 0 : index
    %52 = vector.load %arg8[%c0_28, %c0_29] : memref<16x128xf32, #tpu.memory_space<vmem>>, vector<16x128xf32>
    tpu.vector_store %arg8[%c0_28, %c0_29], %51 {strides = array<i32>} : memref<16x128xf32, #tpu.memory_space<vmem>>, vector<16x128xf32>,
    %53 = vector.extract_strided_slice %51 {offsets = [0, 0], sizes = [16, 16], strides = [1, 1]} : vector<16x128xf32> to vector<16x16xf32>
    %54 = vector.extract_strided_slice %51 {offsets = [0, 16], sizes = [16, 16], strides = [1, 1]} : vector<16x128xf32> to vector<16x16xf32>
    %55 = arith.addf %53, %54 : vector<16x16xf32>
    %56 = vector.extract_strided_slice %51 {offsets = [0, 32], sizes = [16, 16], strides = [1, 1]} : vector<16x128xf32> to vector<16x16xf32>
    %57 = arith.addf %55, %56 : vector<16x16xf32>
    %58 = vector.extract_strided_slice %51 {offsets = [0, 48], sizes = [16, 16], strides = [1, 1]} : vector<16x128xf32> to vector<16x16xf32>
    %59 = arith.addf %57, %58 : vector<16x16xf32>
    %cst_30 = arith.constant 2.500000e-01 : f32
    %60 = vector.broadcast %cst_30 : f32 to vector<16x16xf32>
    %61 = arith.mulf %59, %60 : vector<16x16xf32>
    %c0_31 = arith.constant 0 : index
    %c0_32 = arith.constant 0 : index
    %62 = vector.load %arg9[%c0_31, %c0_32] : memref<16x16xf32, #tpu.memory_space<vmem>>, vector<16x16xf32>
    tpu.vector_store %arg9[%c0_31, %c0_32], %61 {strides = array<i32>} : memref<16x16xf32, #tpu.memory_space<vmem>>, vector<16x16xf32>,
    %63 = vector.extract_strided_slice %51 {offsets = [0, 0], sizes = [16, 16], strides = [1, 1]} : vector<16x128xf32> to vector<16x16xf32>
    %64 = arith.subf %63, %61 : vector<16x16xf32>
    %65 = arith.mulf %64, %64 : vector<16x16xf32>
    %66 = vector.extract_strided_slice %51 {offsets = [0, 16], sizes = [16, 16], strides = [1, 1]} : vector<16x128xf32> to vector<16x16xf32>
    %67 = arith.subf %66, %61 : vector<16x16xf32>
    %68 = arith.mulf %67, %67 : vector<16x16xf32>
    %69 = arith.addf %65, %68 : vector<16x16xf32>
    %70 = vector.extract_strided_slice %51 {offsets = [0, 32], sizes = [16, 16], strides = [1, 1]} : vector<16x128xf32> to vector<16x16xf32>
    %71 = arith.subf %70, %61 : vector<16x16xf32>
    %72 = arith.mulf %71, %71 : vector<16x16xf32>
    %73 = arith.addf %69, %72 : vector<16x16xf32>
    %74 = vector.extract_strided_slice %51 {offsets = [0, 48], sizes = [16, 16], strides = [1, 1]} : vector<16x128xf32> to vector<16x16xf32>
    %75 = arith.subf %74, %61 : vector<16x16xf32>
    %76 = arith.mulf %75, %75 : vector<16x16xf32>
    %77 = arith.addf %73, %76 : vector<16x16xf32>
    %cst_33 = arith.constant 0.333333343 : f32
    %78 = vector.broadcast %cst_33 : f32 to vector<16x16xf32>
    %79 = arith.mulf %77, %78 : vector<16x16xf32>
    %80 = math.sqrt %79 : vector<16x16xf32>
    %c0_34 = arith.constant 0 : index
    %c0_35 = arith.constant 0 : index
    %81 = vector.load %arg10[%c0_34, %c0_35] : memref<16x16xf32, #tpu.memory_space<vmem>>, vector<16x16xf32>
    tpu.vector_store %arg10[%c0_34, %c0_35], %80 {strides = array<i32>} : memref<16x16xf32, #tpu.memory_space<vmem>>, vector<16x16xf32>,
    return
  }
  func.func @transform_0(%arg0: i32) -> (i32, i32) {
    %c0_i32 = arith.constant 0 : i32
    %c0_i32_0 = arith.constant 0 : i32
    return %arg0, %c0_i32 : i32, i32
  }
  func.func @transform_1(%arg0: i32) -> (i32, i32) {
    %c0_i32 = arith.constant 0 : i32
    %c0_i32_0 = arith.constant 0 : i32
    %c0_i32_1 = arith.constant 0 : i32
    return %c0_i32, %c0_i32_0 : i32, i32
  }
  func.func @transform_2(%arg0: i32) -> (i32, i32) {
    %c0_i32 = arith.constant 0 : i32
    %c0_i32_0 = arith.constant 0 : i32
    %c0_i32_1 = arith.constant 0 : i32
    return %c0_i32, %c0_i32_0 : i32, i32
  }
  func.func @transform_3(%arg0: i32) -> (i32, i32, i32) {
    %c0_i32 = arith.constant 0 : i32
    %c0_i32_0 = arith.constant 0 : i32
    %c0_i32_1 = arith.constant 0 : i32
    %c0_i32_2 = arith.constant 0 : i32
    return %c0_i32, %c0_i32_0, %c0_i32_1 : i32, i32, i32
  }
  func.func @transform_4(%arg0: i32) -> (i32, i32, i32) {
    %c0_i32 = arith.constant 0 : i32
    %c0_i32_0 = arith.constant 0 : i32
    %c0_i32_1 = arith.constant 0 : i32
    %c0_i32_2 = arith.constant 0 : i32
    return %c0_i32, %c0_i32_0, %c0_i32_1 : i32, i32, i32
  }
  func.func @transform_5(%arg0: i32) -> (i32, i32) {
    %c0_i32 = arith.constant 0 : i32
    %c0_i32_0 = arith.constant 0 : i32
    %c0_i32_1 = arith.constant 0 : i32
    return %c0_i32, %c0_i32_0 : i32, i32
  }
  func.func @transform_6(%arg0: i32) -> (i32, i32) {
    %c0_i32 = arith.constant 0 : i32
    %c0_i32_0 = arith.constant 0 : i32
    %c0_i32_1 = arith.constant 0 : i32
    return %c0_i32, %c0_i32_0 : i32, i32
  }
  func.func @transform_7(%arg0: i32) -> (i32, i32) {
    %c0_i32 = arith.constant 0 : i32
    %c0_i32_0 = arith.constant 0 : i32
    return %arg0, %c0_i32 : i32, i32
  }
  func.func @transform_8(%arg0: i32) -> (i32, i32) {
    %c0_i32 = arith.constant 0 : i32
    %c0_i32_0 = arith.constant 0 : i32
    return %arg0, %c0_i32 : i32, i32
  }
  func.func @transform_9(%arg0: i32) -> (i32, i32) {
    %c0_i32 = arith.constant 0 : i32
    %c0_i32_0 = arith.constant 0 : i32
    return %arg0, %c0_i32 : i32, i32
  }
}

</mosaic_0001>

<llo_original>
// kernel: tail_ensemble_forward.1
$region0: #{tail_ensemble_forward.1}
  #allocation0 [shape = 'u32[]', space=smem, size = 0x4, offset = 0x4, fixed_abs, tag = 'smem constant byte address 0x4 - core index']
  #allocation1 [shape = 'u32[72,128]{1,0:T(1,128)}', space=vmem, size = 0x9000, scoped, tag = 'internal scratch']
  %s0 = inlined_call_operand.hbm [shape: f32[16,32], index: 0, kind: input, shape index: {}]
  %s1 = inlined_call_operand.hbm [shape: f32[32,128], index: 1, kind: input, shape index: {}]
  %s2 = inlined_call_operand.vmem [shape: f32[1,128], index: 2, kind: input, shape index: {}]
  %s3 = inlined_call_operand.hbm [shape: f32[1,128,128], index: 3, kind: input, shape index: {}]
  %s4 = inlined_call_operand.vmem [shape: f32[1,1,128], index: 4, kind: input, shape index: {}]
  %s5 = inlined_call_operand.hbm [shape: f32[128,128], index: 5, kind: input, shape index: {}]
  %s6 = inlined_call_operand.vmem [shape: f32[1,128], index: 6, kind: input, shape index: {}]
  %s7 = inlined_call_operand.vmem [shape: f32[16,128], index: 7, kind: output, shape index: {0}]
  %s8 = inlined_call_operand.hbm [shape: f32[16,16], index: 8, kind: output, shape index: {1}]
  %s9 = inlined_call_operand.hbm [shape: f32[16,16], index: 9, kind: output, shape index: {2}]
  %10 = xla_tuple %s7, %s8, %s9
  %s11 = sld [smem:[#allocation0]]
  $region70: #{tail_ensemble_forward.1} parent=0
    _
  %s13 = ssub.s32 1, %s11
  %s14 = scalar_select 0, %s13, %s11
  $region1: #{tail_ensemble_forward.1} parent=0
    #allocation2 [shape = 'u8[8192]{0}', space=vmem, size = 0x2000, scoped, tag = 'input window, operand 0, single buffered']
    #allocation3 [shape = 's32[1]{0}', space=sflag, size = 0x4, scoped, tag = 'scoped memory for tail_ensemble_forward.1']
    #allocation4 [shape = 's32[1]{0}', space=sflag, size = 0x4, scoped, tag = 'scoped memory for tail_ensemble_forward.1']
    #allocation5 [shape = 'u8[16384]{0}', space=vmem, size = 0x4000, scoped, tag = 'input window, operand 1, single buffered']
    #allocation6 [shape = 's32[1]{0}', space=sflag, size = 0x4, scoped, tag = 'scoped memory for tail_ensemble_forward.1']
    #allocation7 [shape = 'u8[65536]{0}', space=vmem, size = 0x10000, scoped, tag = 'input window, operand 3, single buffered']
    #allocation8 [shape = 'u8[65536]{0}', space=vmem, size = 0x10000, scoped, tag = 'input window, operand 5, single buffered']
    #allocation9 [shape = 's32[1]{0}', space=sflag, size = 0x4, scoped, tag = 'scoped memory for tail_ensemble_forward.1']
    #allocation10 [shape = 'u8[8192]{0}', space=vmem, size = 0x2000, scoped, tag = 'output window, operand 1, single buffered']
    #allocation11 [shape = 'u8[8192]{0}', space=vmem, size = 0x2000, scoped, tag = 'output window, operand 2, single buffered']
    #allocation12 [shape = 's32[1]{0}', space=sflag, size = 0x4, scoped, tag = 'scoped memory for tail_ensemble_forward.1']
    %15 = vsyncpa [#allocation3], 0
    %16 = vsyncpa [#allocation6], 0
    %17 = vsyncpa [#allocation9], 0
    %18 = vsyncpa [#allocation4], 0
    %19 = vsyncpa [#allocation12], 0
    // Predicated region
    $region2: #{tail_ensemble_forward.1} parent=1 // pred_check
      _
    $region3: #{tail_ensemble_forward.1} parent=1 // pred_check_branch
      %21 = sbr.rel (0) target = $region5
    $region4: #{tail_ensemble_forward.1} parent=1 // pred_region
      %23 = vsyncadd [#allocation3], 0
      %s24 = sshll.u32 %s0, 4
      %s25 = int_to_ptr.hbm [resolvable:$true] %s24
      %s26 = sshll.u32 [#allocation2], 4
      %s27 = int_to_ptr.vmem [resolvable:$true] %s26
      %32 = dma.hbm_to_vmem [thread:$0]  %s25, 256, %s27, [#allocation3], 128, 128, 8
    $region5: #{tail_ensemble_forward.1} parent=1 // pred_fallthru
      _
    // Predicated region
    $region6: #{tail_ensemble_forward.1} parent=1 // pred_check
      _
    $region7: #{tail_ensemble_forward.1} parent=1 // pred_check_branch
      %34 = sbr.rel (0) target = $region9
    $region8: #{tail_ensemble_forward.1} parent=1 // pred_region
      %36 = vsyncadd [#allocation6], 0
      %s37 = sshll.u32 %s1, 4
      %s38 = int_to_ptr.hbm [resolvable:$true] %s37
      %s39 = sshll.u32 [#allocation5], 4
      %s40 = int_to_ptr.vmem [resolvable:$true] %s39
      %45 = dma.hbm_to_vmem [thread:$0]  %s38, 512, %s40, [#allocation6], 128, 128, 8
    $region9: #{tail_ensemble_forward.1} parent=1 // pred_fallthru
      _
    // Predicated region
    $region10: #{tail_ensemble_forward.1} parent=1 // pred_check
      _
    $region11: #{tail_ensemble_forward.1} parent=1 // pred_check_branch
      %47 = sbr.rel (0) target = $region13
    $region12: #{tail_ensemble_forward.1} parent=1 // pred_region
      _
    $region13: #{tail_ensemble_forward.1} parent=1 // pred_fallthru
      _
    // Predicated region
    $region14: #{tail_ensemble_forward.1} parent=1 // pred_check
      _
    $region15: #{tail_ensemble_forward.1} parent=1 // pred_check_branch
      %49 = sbr.rel (0) target = $region17
    $region16: #{tail_ensemble_forward.1} parent=1 // pred_region
      %51 = vsyncadd [#allocation6], 0
      %s52 = sshll.u32 %s3, 4
      %s53 = int_to_ptr.hbm [resolvable:$true] %s52
      %s54 = sshll.u32 [#allocation7], 4
      %s55 = int_to_ptr.vmem [resolvable:$true] %s54
      %60 = dma.hbm_to_vmem [thread:$0]  %s53, 2048, %s55, [#allocation6], 128, 128, 8
    $region17: #{tail_ensemble_forward.1} parent=1 // pred_fallthru
      _
    // Predicated region
    $region18: #{tail_ensemble_forward.1} parent=1 // pred_check
      _
    $region19: #{tail_ensemble_forward.1} parent=1 // pred_check_branch
      %62 = sbr.rel (0) target = $region21
    $region20: #{tail_ensemble_forward.1} parent=1 // pred_region
      _
    $region21: #{tail_ensemble_forward.1} parent=1 // pred_fallthru
      _
    // Predicated region
    $region22: #{tail_ensemble_forward.1} parent=1 // pred_check
      _
    $region23: #{tail_ensemble_forward.1} parent=1 // pred_check_branch
      %64 = sbr.rel (0) target = $region25
    $region24: #{tail_ensemble_forward.1} parent=1 // pred_region
      %66 = vsyncadd [#allocation9], 0
      %s67 = sshll.u32 %s5, 4
      %s68 = int_to_ptr.hbm [resolvable:$true] %s67
      %s69 = sshll.u32 [#allocation8], 4
      %s70 = int_to_ptr.vmem [resolvable:$true] %s69
      %75 = dma.hbm_to_vmem [thread:$0]  %s68, 2048, %s70, [#allocation9], 128, 128, 8
    $region25: #{tail_ensemble_forward.1} parent=1 // pred_fallthru
      _
    // Predicated region
    $region26: #{tail_ensemble_forward.1} parent=1 // pred_check
      _
    $region27: #{tail_ensemble_forward.1} parent=1 // pred_check_branch
      %77 = sbr.rel (0) target = $region29
    $region28: #{tail_ensemble_forward.1} parent=1 // pred_region
      _
    $region29: #{tail_ensemble_forward.1} parent=1 // pred_fallthru
      _
    // Predicated region
    $region30: #{tail_ensemble_forward.1} parent=1 // pred_check
      _
    $region31: #{tail_ensemble_forward.1} parent=1 // pred_check_branch
      %79 = sbr.rel (0) target = $region33
    $region32: #{tail_ensemble_forward.1} parent=1 // pred_region
      %81 = dma.done [#allocation3], 256
    $region33: #{tail_ensemble_forward.1} parent=1 // pred_fallthru
      _
    // Predicated region
    $region34: #{tail_ensemble_forward.1} parent=1 // pred_check
      _
    $region35: #{tail_ensemble_forward.1} parent=1 // pred_check_branch
      %83 = sbr.rel (0) target = $region37
    $region36: #{tail_ensemble_forward.1} parent=1 // pred_region
      %85 = dma.done [#allocation6], 512
    $region37: #{tail_ensemble_forward.1} parent=1 // pred_fallthru
      _
    // Predicated region
    $region38: #{tail_ensemble_forward.1} parent=1 // pred_check
      _
    $region39: #{tail_ensemble_forward.1} parent=1 // pred_check_branch
      %87 = sbr.rel (0) target = $region41
    $region40: #{tail_ensemble_forward.1} parent=1 // pred_region
      %89 = dma.done [#allocation6], 2048
    $region41: #{tail_ensemble_forward.1} parent=1 // pred_fallthru
      _
    // Predicated region
    $region42: #{tail_ensemble_forward.1} parent=1 // pred_check
      _
    $region43: #{tail_ensemble_forward.1} parent=1 // pred_check_branch
      %91 = sbr.rel (0) target = $region45
    $region44: #{tail_ensemble_forward.1} parent=1 // pred_region
      %93 = dma.done [#allocation9], 2048
    $region45: #{tail_ensemble_forward.1} parent=1 // pred_fallthru
      _
    %v94 = vld [vmem:[#allocation2] sm:$0xff]
    %v95 = vld [vmem:[#allocation2 + $0x8] sm:$0xff]
    %vm96 = vcmask 261120
    %v97 = vsel %vm96, %v94, 0.0
    %98 = vadd.xlane.f32.xlu0 %v97
    %v99 = vpop.xlane.xlu0 %98
    %v100 = vsel %vm96, %v95, 0.0
    %101 = vadd.xlane.f32.xlu0 %v100
    %v102 = vpop.xlane.xlu0 %101
    %v103 = vrcp.pop 32.0
    %v104 = vmul.f32 32.0, %v103
    %v105 = vsub.f32 1.0, %v104
    %v106 = vmul.f32 %v103, %v105
    %v107 = vadd.f32 %v103, %v106
    %vm108 = vweird.f32 %v103
    %v109 = vsel %vm108, %v103, %v107
    %v110 = vmul.f32 %v99, %v109
    %v111 = vmul.f32 %v102, %v109
    %v112 = vsub.f32 %v94, %v110
    %v113 = vsub.f32 %v95, %v111
    %v114 = vmul.f32 %v112, %v112
    %v115 = vmul.f32 %v113, %v113
    %v116 = vsel %vm96, %v114, 0.0
    %117 = vadd.xlane.f32.xlu0 %v116
    %v118 = vpop.xlane.xlu0 %117
    %v119 = vsel %vm96, %v115, 0.0
    %120 = vadd.xlane.f32.xlu0 %v119
    %v121 = vpop.xlane.xlu0 %120
    %v122 = vmul.f32 %v118, %v109
    %v123 = vmul.f32 %v121, %v109
    %v124 = vadd.f32 %v122, 1e-05
    %v125 = vadd.f32 %v123, 1e-05
    %v126 = vrsqrt.pop %v124
    %v127 = vmul.f32 %v126, %v124
    %v128 = vmul.f32 %v127, %v126
    %v129 = vmul.f32 0.5, %v128
    %v130 = vsub.f32 1.5, %v129
    %v131 = vmul.f32 %v126, %v130
    %vm132 = vweird.f32 %v124
    %vm133 = vweird.f32 %v126
    %vm134 = vmor %vm132, %vm133
    %v135 = vsel %vm134, %v126, %v131
    %v136 = vrsqrt.pop %v125
    %v137 = vmul.f32 %v136, %v125
    %v138 = vmul.f32 %v137, %v136
    %v139 = vmul.f32 0.5, %v138
    %v140 = vsub.f32 1.5, %v139
    %v141 = vmul.f32 %v136, %v140
    %vm142 = vweird.f32 %v125
    %vm143 = vweird.f32 %v136
    %vm144 = vmor %vm142, %vm143
    %v145 = vsel %vm144, %v136, %v141
    %v146 = vmul.f32 %v112, %v135
    %v147 = vmul.f32 %v113, %v145
    %v148 = vld [vmem:[#allocation5] sm:$0xff]
    %v149 = vld [vmem:[#allocation5 + $0x8] sm:$0xff]
    %v150 = vld [vmem:[#allocation5 + $0x10] sm:$0xff]
    %v151 = vld [vmem:[#allocation5 + $0x18] sm:$0xff]
    %v152 = vld [vmem:[%s2] sm:$0x1]
    %v154 = vperm.slane %v152, 0
    %v157 = vsel %vm96, %v146, 0
    %v160 = vsel %vm96, %v147, 0
    %162 = vmatpush.msra.mxu0 0.0
    %163 = vmatpush.msra.mxu0 0.0
    %164 = vmatpush.msra.mxu0 0.0
    %165 = vmatpush.msra.mxu0 0.0
    %166 = vmatpush.msra.mxu0 0.0
    %167 = vmatpush.msra.mxu0 0.0
    %168 = vmatpush.msra.mxu0 0.0
    %169 = vmatpush.msra.mxu0 0.0
    %170 = vmatpush.msra.mxu0 0.0
    %171 = vmatpush.msra.mxu0 0.0
    %172 = vmatpush.msra.mxu0 0.0
    %173 = vmatpush.msra.mxu0 0.0
    %174 = vmatpush.msra.mxu0 %v151
    %175 = vmatpush.msra.mxu0 %v150
    %176 = vmatpush.msra.mxu0 %v149
    %177 = vmatpush.msra.mxu0 %v148
    %178 = vmatmul.f32.gmra.mxu0 %v157
    %v179 = vpop.f32.mrf.mxu0
    %v180 = vadd.f32 %v154, %v179
    %181 = vmatmul.f32.gmra.mxu0 %v160
    %v182 = vpop.f32.mrf.mxu0
    %v183 = vadd.f32 %v154, %v182
    %184 = vdwg.mxu0
    %v185 = vmul.f32 %v180, 0.5
    %v186 = vmul.f32 %v183, 0.5
    %v187 = vmul.f32 %v180, 0.70710677
    %v188 = vmul.f32 %v183, 0.70710677
    %v189 = vmul.f32 %v187, %v187
    %v190 = vmin.f32 16.0, %v189
    %v191 = vmul.f32 %v190, 2.1237322e-06
    %v192 = vadd.f32 %v191, 0.00028619796
    %v193 = vmul.f32 %v190, %v192
    %v194 = vadd.f32 %v193, 0.0036580483
    %v195 = vmul.f32 %v190, %v194
    %v196 = vadd.f32 %v195, 0.05243302
    %v197 = vmul.f32 %v190, %v196
    %v198 = vadd.f32 %v197, 0.18741608
    %v199 = vmul.f32 %v190, %v198
    %v200 = vadd.f32 %v199, 1.1283791
    %v201 = vmul.f32 %v187, %v200
    %v202 = vmul.f32 %v190, 3.8918573e-05
    %v203 = vadd.f32 %v202, 0.001143296
    %v204 = vmul.f32 %v190, %v203
    %v205 = vadd.f32 %v204, 0.014752088
    %v206 = vmul.f32 %v190, %v205
    %v207 = vadd.f32 %v206, 0.112945676
    %v208 = vmul.f32 %v190, %v207
    %v209 = vadd.f32 %v208, 0.4994258
    %v210 = vmul.f32 %v190, %v209
    %v211 = vadd.f32 %v210, 1.0
    %v212 = vrcp.pop %v211
    %v213 = vmul.f32 %v211, %v212
    %v214 = vsub.f32 1.0, %v213
    %v215 = vmul.f32 %v212, %v214
    %v216 = vadd.f32 %v212, %v215
    %vm217 = vweird.f32 %v211
    %vm218 = vweird.f32 %v212
    %vm219 = vmor %vm217, %vm218
    %v220 = vsel %vm219, %v212, %v216
    %v221 = vand.u32 2147483647, %v211
    %vm222 = vcmp.eq.f32.partialorder %v221, 8.507059e+37
    %v223 = vand.u32 %v211, 2147483648
    %v224 = vor.u32 1.1754944e-38, %v223
    %v225 = vsel %vm222, %v224, %v220
    %v226 = vmul.f32 %v201, %v225
    %v227 = vmin.f32 %v226, 1.0
    %v228 = vmax.f32 %v227, -1.0
    %v229 = vmul.f32 %v188, %v188
    %v230 = vmin.f32 16.0, %v229
    %v231 = vmul.f32 %v230, 2.1237322e-06
    %v232 = vadd.f32 %v231, 0.00028619796
    %v233 = vmul.f32 %v230, %v232
    %v234 = vadd.f32 %v233, 0.0036580483
    %v235 = vmul.f32 %v230, %v234
    %v236 = vadd.f32 %v235, 0.05243302
    %v237 = vmul.f32 %v230, %v236
    %v238 = vadd.f32 %v237, 0.18741608
    %v239 = vmul.f32 %v230, %v238
    %v240 = vadd.f32 %v239, 1.1283791
    %v241 = vmul.f32 %v188, %v240
    %v242 = vmul.f32 %v230, 3.8918573e-05
    %v243 = vadd.f32 %v242, 0.001143296
    %v244 = vmul.f32 %v230, %v243
    %v245 = vadd.f32 %v244, 0.014752088
    %v246 = vmul.f32 %v230, %v245
    %v247 = vadd.f32 %v246, 0.112945676
    %v248 = vmul.f32 %v230, %v247
    %v249 = vadd.f32 %v248, 0.4994258
    %v250 = vmul.f32 %v230, %v249
    %v251 = vadd.f32 %v250, 1.0
    %v252 = vrcp.pop %v251
    %v253 = vmul.f32 %v251, %v252
    %v254 = vsub.f32 1.0, %v253
    %v255 = vmul.f32 %v252, %v254
    %v256 = vadd.f32 %v252, %v255
    %vm257 = vweird.f32 %v251
    %vm258 = vweird.f32 %v252
    %vm259 = vmor %vm257, %vm258
    %v260 = vsel %vm259, %v252, %v256
    %v261 = vand.u32 2147483647, %v251
    %vm262 = vcmp.eq.f32.partialorder %v261, 8.507059e+37
    %v263 = vand.u32 %v251, 2147483648
    %v264 = vor.u32 1.1754944e-38, %v263
    %v265 = vsel %vm262, %v264, %v260
    %v266 = vmul.f32 %v241, %v265
    %v267 = vmin.f32 %v266, 1.0
    %v268 = vmax.f32 %v267, -1.0
    %v269 = vadd.f32 %v228, 1.0
    %v270 = vadd.f32 %v268, 1.0
    %v271 = vmul.f32 %v185, %v269
    %v272 = vmul.f32 %v186, %v270
    %v273 = vld [vmem:[#allocation7] sm:$0xff]
    %v274 = vld [vmem:[#allocation7 + $0x8] sm:$0xff]
    %v275 = vld [vmem:[#allocation7 + $0x10] sm:$0xff]
    %v276 = vld [vmem:[#allocation7 + $0x18] sm:$0xff]
    %v277 = vld [vmem:[#allocation7 + $0x20] sm:$0xff]
    %v278 = vld [vmem:[#allocation7 + $0x28] sm:$0xff]
    %v279 = vld [vmem:[#allocation7 + $0x30] sm:$0xff]
    %v280 = vld [vmem:[#allocation7 + $0x38] sm:$0xff]
    %v281 = vld [vmem:[#allocation7 + $0x40] sm:$0xff]
    %v282 = vld [vmem:[#allocation7 + $0x48] sm:$0xff]
    %v283 = vld [vmem:[#allocation7 + $0x50] sm:$0xff]
    %v284 = vld [vmem:[#allocation7 + $0x58] sm:$0xff]
    %v285 = vld [vmem:[#allocation7 + $0x60] sm:$0xff]
    %v286 = vld [vmem:[#allocation7 + $0x68] sm:$0xff]
    %v287 = vld [vmem:[#allocation7 + $0x70] sm:$0xff]
    %v288 = vld [vmem:[#allocation7 + $0x78] sm:$0xff]
    %v289 = vld [vmem:[%s4] sm:$0x1]
    %v291 = vperm.slane %v289, 0
    %293 = vmatpush.msra.mxu0 %v288
    %294 = vmatpush.msra.mxu0 %v287
    %295 = vmatpush.msra.mxu0 %v286
    %296 = vmatpush.msra.mxu0 %v285
    %297 = vmatpush.msra.mxu0 %v284
    %298 = vmatpush.msra.mxu0 %v283
    %299 = vmatpush.msra.mxu0 %v282
    %300 = vmatpush.msra.mxu0 %v281
    %301 = vmatpush.msra.mxu0 %v280
    %302 = vmatpush.msra.mxu0 %v279
    %303 = vmatpush.msra.mxu0 %v278
    %304 = vmatpush.msra.mxu0 %v277
    %305 = vmatpush.msra.mxu0 %v276
    %306 = vmatpush.msra.mxu0 %v275
    %307 = vmatpush.msra.mxu0 %v274
    %308 = vmatpush.msra.mxu0 %v273
    %309 = vmatmul.f32.gmra.mxu0 %v271
    %v310 = vpop.f32.mrf.mxu0
    %v311 = vadd.f32 %v291, %v310
    %312 = vmatmul.f32.gmra.mxu0 %v272
    %v313 = vpop.f32.mrf.mxu0
    %v314 = vadd.f32 %v291, %v313
    %315 = vdwg.mxu0
    %v316 = vmul.f32 %v311, 0.5
    %v317 = vmul.f32 %v314, 0.5
    %v318 = vmul.f32 %v311, 0.70710677
    %v319 = vmul.f32 %v314, 0.70710677
    %v320 = vmul.f32 %v318, %v318
    %v321 = vmin.f32 16.0, %v320
    %v322 = vmul.f32 %v321, 2.1237322e-06
    %v323 = vadd.f32 %v322, 0.00028619796
    %v324 = vmul.f32 %v321, %v323
    %v325 = vadd.f32 %v324, 0.0036580483
    %v326 = vmul.f32 %v321, %v325
    %v327 = vadd.f32 %v326, 0.05243302
    %v328 = vmul.f32 %v321, %v327
    %v329 = vadd.f32 %v328, 0.18741608
    %v330 = vmul.f32 %v321, %v329
    %v331 = vadd.f32 %v330, 1.1283791
    %v332 = vmul.f32 %v318, %v331
    %v333 = vmul.f32 %v321, 3.8918573e-05
    %v334 = vadd.f32 %v333, 0.001143296
    %v335 = vmul.f32 %v321, %v334
    %v336 = vadd.f32 %v335, 0.014752088
    %v337 = vmul.f32 %v321, %v336
    %v338 = vadd.f32 %v337, 0.112945676
    %v339 = vmul.f32 %v321, %v338
    %v340 = vadd.f32 %v339, 0.4994258
    %v341 = vmul.f32 %v321, %v340
    %v342 = vadd.f32 %v341, 1.0
    %v343 = vrcp.pop %v342
    %v344 = vmul.f32 %v342, %v343
    %v345 = vsub.f32 1.0, %v344
    %v346 = vmul.f32 %v343, %v345
    %v347 = vadd.f32 %v343, %v346
    %vm348 = vweird.f32 %v342
    %vm349 = vweird.f32 %v343
    %vm350 = vmor %vm348, %vm349
    %v351 = vsel %vm350, %v343, %v347
    %v352 = vand.u32 2147483647, %v342
    %vm353 = vcmp.eq.f32.partialorder %v352, 8.507059e+37
    %v354 = vand.u32 %v342, 2147483648
    %v355 = vor.u32 1.1754944e-38, %v354
    %v356 = vsel %vm353, %v355, %v351
    %v357 = vmul.f32 %v332, %v356
    %v358 = vmin.f32 %v357, 1.0
    %v359 = vmax.f32 %v358, -1.0
    %v360 = vmul.f32 %v319, %v319
    %v361 = vmin.f32 16.0, %v360
    %v362 = vmul.f32 %v361, 2.1237322e-06
    %v363 = vadd.f32 %v362, 0.00028619796
    %v364 = vmul.f32 %v361, %v363
    %v365 = vadd.f32 %v364, 0.0036580483
    %v366 = vmul.f32 %v361, %v365
    %v367 = vadd.f32 %v366, 0.05243302
    %v368 = vmul.f32 %v361, %v367
    %v369 = vadd.f32 %v368, 0.18741608
    %v370 = vmul.f32 %v361, %v369
    %v371 = vadd.f32 %v370, 1.1283791
    %v372 = vmul.f32 %v319, %v371
    %v373 = vmul.f32 %v361, 3.8918573e-05
    %v374 = vadd.f32 %v373, 0.001143296
    %v375 = vmul.f32 %v361, %v374
    %v376 = vadd.f32 %v375, 0.014752088
    %v377 = vmul.f32 %v361, %v376
    %v378 = vadd.f32 %v377, 0.112945676
    %v379 = vmul.f32 %v361, %v378
    %v380 = vadd.f32 %v379, 0.4994258
    %v381 = vmul.f32 %v361, %v380
    %v382 = vadd.f32 %v381, 1.0
    %v383 = vrcp.pop %v382
    %v384 = vmul.f32 %v382, %v383
    %v385 = vsub.f32 1.0, %v384
    %v386 = vmul.f32 %v383, %v385
    %v387 = vadd.f32 %v383, %v386
    %vm388 = vweird.f32 %v382
    %vm389 = vweird.f32 %v383
    %vm390 = vmor %vm388, %vm389
    %v391 = vsel %vm390, %v383, %v387
    %v392 = vand.u32 2147483647, %v382
    %vm393 = vcmp.eq.f32.partialorder %v392, 8.507059e+37
    %v394 = vand.u32 %v382, 2147483648
    %v395 = vor.u32 1.1754944e-38, %v394
    %v396 = vsel %vm393, %v395, %v391
    %v397 = vmul.f32 %v372, %v396
    %v398 = vmin.f32 %v397, 1.0
    %v399 = vmax.f32 %v398, -1.0
    %v400 = vadd.f32 %v359, 1.0
    %v401 = vadd.f32 %v399, 1.0
    %v402 = vmul.f32 %v316, %v400
    %v403 = vmul.f32 %v317, %v401
    %v404 = vld [vmem:[#allocation8] sm:$0xff]
    %v405 = vld [vmem:[#allocation8 + $0x8] sm:$0xff]
    %v406 = vld [vmem:[#allocation8 + $0x10] sm:$0xff]
    %v407 = vld [vmem:[#allocation8 + $0x18] sm:$0xff]
    %v408 = vld [vmem:[#allocation8 + $0x20] sm:$0xff]
    %v409 = vld [vmem:[#allocation8 + $0x28] sm:$0xff]
    %v410 = vld [vmem:[#allocation8 + $0x30] sm:$0xff]
    %v411 = vld [vmem:[#allocation8 + $0x38] sm:$0xff]
    %v412 = vld [vmem:[#allocation8 + $0x40] sm:$0xff]
    %v413 = vld [vmem:[#allocation8 + $0x48] sm:$0xff]
    %v414 = vld [vmem:[#allocation8 + $0x50] sm:$0xff]
    %v415 = vld [vmem:[#allocation8 + $0x58] sm:$0xff]
    %v416 = vld [vmem:[#allocation8 + $0x60] sm:$0xff]
    %v417 = vld [vmem:[#allocation8 + $0x68] sm:$0xff]
    %v418 = vld [vmem:[#allocation8 + $0x70] sm:$0xff]
    %v419 = vld [vmem:[#allocation8 + $0x78] sm:$0xff]
    %v420 = vld [vmem:[%s6] sm:$0x1]
    %v422 = vperm.slane %v420, 0
    %424 = vmatpush.msra.mxu0 %v419
    %425 = vmatpush.msra.mxu0 %v418
    %426 = vmatpush.msra.mxu0 %v417
    %427 = vmatpush.msra.mxu0 %v416
    %428 = vmatpush.msra.mxu0 %v415
    %429 = vmatpush.msra.mxu0 %v414
    %430 = vmatpush.msra.mxu0 %v413
    %431 = vmatpush.msra.mxu0 %v412
    %432 = vmatpush.msra.mxu0 %v411
    %433 = vmatpush.msra.mxu0 %v410
    %434 = vmatpush.msra.mxu0 %v409
    %435 = vmatpush.msra.mxu0 %v408
    %436 = vmatpush.msra.mxu0 %v407
    %437 = vmatpush.msra.mxu0 %v406
    %438 = vmatpush.msra.mxu0 %v405
    %439 = vmatpush.msra.mxu0 %v404
    %440 = vmatmul.f32.gmra.mxu0 %v402
    %v441 = vpop.f32.mrf.mxu0
    %v442 = vadd.f32 %v422, %v441
    %443 = vmatmul.f32.gmra.mxu0 %v403
    %v444 = vpop.f32.mrf.mxu0
    %v445 = vadd.f32 %v422, %v444
    %446 = vdwg.mxu0
    %447 = vst [vmem:[%s7] sm:$0xff] %v442
    %448 = vst [vmem:[%s7 + $0x8] sm:$0xff] %v445
    %451 = vrot.lane.b32.xlu0 %v442, 112
    %v452 = vpop.permute.xlu0 %451
    %453 = vrot.lane.b32.xlu0 %v445, 112
    %v454 = vpop.permute.xlu0 %453
    %v457 = vadd.f32 %v442, %v452
    %v458 = vadd.f32 %v445, %v454
    %459 = vrot.lane.b32.xlu0 %v442, 96
    %v460 = vpop.permute.xlu0 %459
    %461 = vrot.lane.b32.xlu0 %v445, 96
    %v462 = vpop.permute.xlu0 %461
    %v465 = vadd.f32 %v457, %v460
    %v466 = vadd.f32 %v458, %v462
    %467 = vrot.lane.b32.xlu0 %v442, 80
    %v468 = vpop.permute.xlu0 %467
    %469 = vrot.lane.b32.xlu0 %v445, 80
    %v470 = vpop.permute.xlu0 %469
    %v473 = vadd.f32 %v465, %v468
    %v474 = vadd.f32 %v466, %v470
    %v475 = vmul.f32 %v473, 0.25
    %v476 = vmul.f32 %v474, 0.25
    %vm477 = vcmask 130048
    %478 = vst.msk [vmem:[#allocation10] sm:$0xff] %vm477, %v475
    %479 = vst.msk [vmem:[#allocation10 + $0x8] sm:$0xff] %vm477, %v476
    %v480 = vsub.f32 %v442, %v475
    %v481 = vsub.f32 %v445, %v476
    %v482 = vmul.f32 %v480, %v480
    %v483 = vmul.f32 %v481, %v481
    %486 = vrot.lane.b32.xlu0 %v475, 16
    %v487 = vpop.permute.xlu0 %486
    %488 = vrot.lane.b32.xlu0 %v476, 16
    %v489 = vpop.permute.xlu0 %488
    %v492 = vsub.f32 %v442, %v487
    %v493 = vsub.f32 %v445, %v489
    %v494 = vmul.f32 %v492, %v492
    %v495 = vmul.f32 %v493, %v493
    %498 = vrot.lane.b32.xlu0 %v494, 112
    %v499 = vpop.permute.xlu0 %498
    %500 = vrot.lane.b32.xlu0 %v495, 112
    %v501 = vpop.permute.xlu0 %500
    %v504 = vadd.f32 %v482, %v499
    %v505 = vadd.f32 %v483, %v501
    %506 = vrot.lane.b32.xlu0 %v475, 32
    %v507 = vpop.permute.xlu0 %506
    %508 = vrot.lane.b32.xlu0 %v476, 32
    %v509 = vpop.permute.xlu0 %508
    %v512 = vsub.f32 %v442, %v507
    %v513 = vsub.f32 %v445, %v509
    %v514 = vmul.f32 %v512, %v512
    %v515 = vmul.f32 %v513, %v513
    %518 = vrot.lane.b32.xlu0 %v514, 96
    %v519 = vpop.permute.xlu0 %518
    %520 = vrot.lane.b32.xlu0 %v515, 96
    %v521 = vpop.permute.xlu0 %520
    %v524 = vadd.f32 %v504, %v519
    %v525 = vadd.f32 %v505, %v521
    %526 = vrot.lane.b32.xlu0 %v475, 48
    %v527 = vpop.permute.xlu0 %526
    %528 = vrot.lane.b32.xlu0 %v476, 48
    %v529 = vpop.permute.xlu0 %528
    %v532 = vsub.f32 %v442, %v527
    %v533 = vsub.f32 %v445, %v529
    %v534 = vmul.f32 %v532, %v532
    %v535 = vmul.f32 %v533, %v533
    %538 = vrot.lane.b32.xlu0 %v534, 80
    %v539 = vpop.permute.xlu0 %538
    %540 = vrot.lane.b32.xlu0 %v535, 80
    %v541 = vpop.permute.xlu0 %540
    %v544 = vadd.f32 %v524, %v539
    %v545 = vadd.f32 %v525, %v541
    %v546 = vmul.f32 %v544, 0.33333334
    %v547 = vmul.f32 %v545, 0.33333334
    %v548 = vrsqrt.pop %v546
    %v549 = vmul.f32 %v548, %v546
    %v550 = vmul.f32 %v549, %v548
    %v551 = vmul.f32 0.5, %v550
    %v552 = vsub.f32 1.5, %v551
    %v553 = vmul.f32 %v548, %v552
    %v554 = vmul.f32 %v546, %v553
    %vm555 = vcmp.eq.f32.partialorder %v546, inf
    %v556 = vsel %vm555, %v546, %v554
    %vm557 = vcmp.eq.f32.partialorder %v546, 0.0
    %v558 = vand.u32 %v546, 2147483648
    %v559 = vsel %vm557, %v558, %v556
    %v560 = vrsqrt.pop %v547
    %v561 = vmul.f32 %v560, %v547
    %v562 = vmul.f32 %v561, %v560
    %v563 = vmul.f32 0.5, %v562
    %v564 = vsub.f32 1.5, %v563
    %v565 = vmul.f32 %v560, %v564
    %v566 = vmul.f32 %v547, %v565
    %vm567 = vcmp.eq.f32.partialorder %v547, inf
    %v568 = vsel %vm567, %v547, %v566
    %vm569 = vcmp.eq.f32.partialorder %v547, 0.0
    %v570 = vand.u32 %v547, 2147483648
    %v571 = vsel %vm569, %v570, %v568
    %572 = vst.msk [vmem:[#allocation11] sm:$0xff] %vm477, %v559
    %573 = vst.msk [vmem:[#allocation11 + $0x8] sm:$0xff] %vm477, %v571
    // Predicated region
    $region46: #{tail_ensemble_forward.1} parent=1 // pred_check
      _
    $region47: #{tail_ensemble_forward.1} parent=1 // pred_check_branch
      %575 = sbr.rel (0) target = $region49
    $region48: #{tail_ensemble_forward.1} parent=1 // pred_region
      _
    $region49: #{tail_ensemble_forward.1} parent=1 // pred_fallthru
      _
    // Predicated region
    $region50: #{tail_ensemble_forward.1} parent=1 // pred_check
      _
    $region51: #{tail_ensemble_forward.1} parent=1 // pred_check_branch
      %577 = sbr.rel (0) target = $region53
    $region52: #{tail_ensemble_forward.1} parent=1 // pred_region
      %579 = vsyncadd [#allocation4], 0
      %s580 = sshll.u32 [#allocation10], 4
      %s581 = int_to_ptr.vmem [resolvable:$true] %s580
      %s582 = sshll.u32 %s8, 4
      %s583 = int_to_ptr.hbm [resolvable:$true] %s582
      %588 = dma.vmem_to_hbm [thread:$0]  %s581, 256, %s583, [#allocation4], 128, 128, 8
    $region53: #{tail_ensemble_forward.1} parent=1 // pred_fallthru
      _
    // Predicated region
    $region54: #{tail_ensemble_forward.1} parent=1 // pred_check
      _
    $region55: #{tail_ensemble_forward.1} parent=1 // pred_check_branch
      %590 = sbr.rel (0) target = $region57
    $region56: #{tail_ensemble_forward.1} parent=1 // pred_region
      %592 = vsyncadd [#allocation12], 0
      %s593 = sshll.u32 [#allocation11], 4
      %s594 = int_to_ptr.vmem [resolvable:$true] %s593
      %s595 = sshll.u32 %s9, 4
      %s596 = int_to_ptr.hbm [resolvable:$true] %s595
      %601 = dma.vmem_to_hbm [thread:$0]  %s594, 256, %s596, [#allocation12], 128, 128, 8
    $region57: #{tail_ensemble_forward.1} parent=1 // pred_fallthru
      _
    // Predicated region
    $region58: #{tail_ensemble_forward.1} parent=1 // pred_check
      _
    $region59: #{tail_ensemble_forward.1} parent=1 // pred_check_branch
      %603 = sbr.rel (0) target = $region61
    $region60: #{tail_ensemble_forward.1} parent=1 // pred_region
      _
    $region61: #{tail_ensemble_forward.1} parent=1 // pred_fallthru
      _
    // Predicated region
    $region62: #{tail_ensemble_forward.1} parent=1 // pred_check
      _
    $region63: #{tail_ensemble_forward.1} parent=1 // pred_check_branch
      %605 = sbr.rel (0) target = $region65
    $region64: #{tail_ensemble_forward.1} parent=1 // pred_region
      %607 = dma.done [#allocation4], 256
    $region65: #{tail_ensemble_forward.1} parent=1 // pred_fallthru
      _
    // Predicated region
    $region66: #{tail_ensemble_forward.1} parent=1 // pred_check
      _
    $region67: #{tail_ensemble_forward.1} parent=1 // pred_check_branch
      %609 = sbr.rel (0) target = $region69
    $region68: #{tail_ensemble_forward.1} parent=1 // pred_region
      %611 = dma.done [#allocation12], 256
    $region69: #{tail_ensemble_forward.1} parent=1 // pred_fallthru
      _
    %612 = vsyncpa [#allocation3], 1
    %613 = vsyncpa [#allocation6], 1
    %614 = vsyncpa [#allocation9], 1
    %615 = vsyncpa [#allocation4], 1
    %616 = vsyncpa [#allocation12], 1

</llo_original>
